<compile_context>
chip_gen: v5e
topology: v5e:2x2
jax: 0.10.0
libtpu: 0.0.40
codegen_flags: <defaults>
</compile_context>

<pallas_src>
import jax
import jax.numpy as jnp
from jax.experimental import pallas as pl
from jax.experimental.pallas import tpu as pltpu


def _backproject_kernel(invk_ref, depth_ref, out_ref):
    # invk_ref : SMEM (B, 9)        -- inv_K[:, :3, :3] flattened row-major
    # depth_ref: VMEM (1, TH, W)    -- depth tile for batch b, row-block hb
    # out_ref  : VMEM (1, 4, TH, W) -- cam_points tile
    b = pl.program_id(0)
    hb = pl.program_id(1)

    d = depth_ref[0]                                      # (TH, W)
    th, w = d.shape

    # Pixel coordinates generated on the fly (no HBM traffic, no MXU).
    x = jax.lax.broadcasted_iota(jnp.int32, (th, w), 1).astype(jnp.float32)
    y = (jax.lax.broadcasted_iota(jnp.int32, (th, w), 0)
         + hb * th).astype(jnp.float32)

    k = invk_ref  # scalar reads from SMEM, broadcast into lanes by the VPU
    out_ref[0, 0] = (k[b, 0] * x + k[b, 1] * y + k[b, 2]) * d
    out_ref[0, 1] = (k[b, 3] * x + k[b, 4] * y + k[b, 5]) * d
    out_ref[0, 2] = (k[b, 6] * x + k[b, 7] * y + k[b, 8]) * d
    out_ref[0, 3] = jnp.ones((th, w), dtype=out_ref.dtype)


def _pick_row_tile(H, W, target_bytes=1 << 20):
    """Largest TH dividing H with a depth tile <= ~1 MiB and TH % 8 == 0
    (or TH == H), so the (TH, W) block obeys TPU (8,128)/full-dim tiling and
    the double-buffered working set fits default scoped VMEM everywhere."""
    if H * W * 4 <= target_bytes:
        return H
    best = None
    th = 8
    while th <= H:
        if H % th == 0 and th * W * 4 <= target_bytes:
            best = th
        th += 8
    return best if best is not None else H


def backproject_depth(depth, inv_K):
    """depth: (B, 1, H, W), inv_K: (B, 4, 4) -> cam_points (B, 4, H*W) f32."""
    B, _, H, W = depth.shape
    depth3 = depth.reshape(B, H, W).astype(jnp.float32)
    invk_flat = inv_K[:, :3, :3].reshape(B, 9).astype(jnp.float32)

    TH = _pick_row_tile(H, W)
    n_h = H // TH

    out4 = pl.pallas_call(
        _backproject_kernel,
        out_shape=jax.ShapeDtypeStruct((B, 4, H, W), jnp.float32),
        grid_spec=pltpu.PrefetchScalarGridSpec(
            num_scalar_prefetch=0,
            grid=(B, n_h),
            in_specs=[
                # Tiny (B, 9) coefficient table lives in SMEM, read as scalars.
                pl.BlockSpec(memory_space=pltpu.MemorySpace.SMEM),
                # Dense (TH, W) depth tiles: H on sublanes, W on lanes.
                pl.BlockSpec((1, TH, W), lambda b, h: (b, h, 0)),
            ],
            out_specs=pl.BlockSpec((1, 4, TH, W), lambda b, h: (b, 0, h, 0)),
        ),
        compiler_params=pltpu.CompilerParams(
            dimension_semantics=("parallel", "parallel"),
        ),
    )(invk_flat, depth3)
    # Free row-major reshape to the PyTorch module's (B, 4, H*W) layout.
    return out4.reshape(B, 4, H * W)


def make_pix_coords(height, width):
    # numpy-meshgrid(range(W), range(H), indexing='xy') -> (3, H*W) [x; y; 1]
    xs = jnp.arange(width, dtype=jnp.float32)
    ys = jnp.arange(height, dtype=jnp.float32)
    xg, yg = jnp.meshgrid(xs, ys, indexing="xy")          # each (H, W)
    pix = jnp.stack([xg.reshape(-1), yg.reshape(-1)], axis=0)
    ones = jnp.ones((1, height * width), dtype=jnp.float32)
    return jnp.concatenate([pix, ones], axis=0)


def reference(depth, inv_K, pix_coords):
    B, _, H, W = depth.shape
    cam = jnp.einsum("bij,jn->bin", inv_K[:, :3, :3], pix_coords)
    cam = depth.reshape(B, 1, H * W) * cam
    ones = jnp.ones((B, 1, H * W), dtype=depth.dtype)
    return jnp.concatenate([cam, ones], axis=1)


if __name__ == "__main__":
    B, H, W = 2, 16, 16
    key = jax.random.PRNGKey(0)
    kd, kk = jax.random.split(key)
    depth = jax.random.uniform(kd, (B, 1, H, W), dtype=jnp.float32) * 10.0 + 0.1
    inv_K = jax.random.normal(kk, (B, 4, 4), dtype=jnp.float32) * 0.1 + jnp.eye(4)

    out = backproject_depth(depth, inv_K)
    out = jax.block_until_ready(out)

    ref = reference(depth, inv_K, make_pix_coords(H, W))
    assert out.shape == (B, 4, H * W)
    assert jnp.allclose(out, ref, atol=1e-4, rtol=1e-4), "mismatch vs reference"
    print("KERNEL_OK")
</pallas_src>

<mosaic_0001>
module attributes {stable_mosaic.version = 11 : i64} {
  func.func @_backproject_kernel(%arg0: i32, %arg1: i32, %arg2: memref<2x9xf32, #tpu.memory_space<smem>>, %arg3: memref<1x16x16xf32, #tpu.memory_space<vmem>>, %arg4: memref<1x4x16x16xf32, #tpu.memory_space<vmem>>) attributes {dimension_semantics = [#tpu.dimension_semantics<parallel>, #tpu.dimension_semantics<parallel>], iteration_bounds = array<i64: 2, 1>, scalar_prefetch = 0 : i64, scratch_operands = 0 : i64, tpu.core_type = #tpu.core_type<tc>, window_params = [{transform_indices = @transform_0, window_bounds = array<i64: 2, 9>}, {transform_indices = @transform_1, window_bounds = array<i64: 1, 16, 16>}, {transform_indices = @transform_2, window_bounds = array<i64: 1, 4, 16, 16>}]} {
    %c0 = arith.constant 0 : index
    %c0_0 = arith.constant 0 : index
    %c0_1 = arith.constant 0 : index
    %0 = vector.load %arg3[%c0, %c0_0, %c0_1] : memref<1x16x16xf32, #tpu.memory_space<vmem>>, vector<1x16x16xf32>
    %1 = vector.shape_cast %0 : vector<1x16x16xf32> to vector<16x16xf32>
    %2 = tpu.iota {dimensions = array<i32: 1>} : vector<16x16xi32>
    %3 = arith.sitofp %2 : vector<16x16xi32> to vector<16x16xf32>
    %4 = tpu.iota {dimensions = array<i32: 0>} : vector<16x16xi32>
    %c16_i32 = arith.constant 16 : i32
    %5 = arith.muli %arg1, %c16_i32 : i32
    %6 = vector.broadcast %5 : i32 to vector<16x16xi32>
    %7 = arith.addi %4, %6 : vector<16x16xi32>
    %8 = arith.sitofp %7 : vector<16x16xi32> to vector<16x16xf32>
    %9 = arith.index_cast %arg0 : i32 to index
    %c0_2 = arith.constant 0 : index
    %10 = memref.load %arg2[%9, %c0_2] : memref<2x9xf32, #tpu.memory_space<smem>>
    %11 = vector.broadcast %10 : f32 to vector<16x16xf32>
    %12 = arith.mulf %11, %3 : vector<16x16xf32>
    %13 = arith.index_cast %arg0 : i32 to index
    %c1 = arith.constant 1 : index
    %14 = memref.load %arg2[%13, %c1] : memref<2x9xf32, #tpu.memory_space<smem>>
    %15 = vector.broadcast %14 : f32 to vector<16x16xf32>
    %16 = arith.mulf %15, %8 : vector<16x16xf32>
    %17 = arith.addf %12, %16 : vector<16x16xf32>
    %18 = arith.index_cast %arg0 : i32 to index
    %c2 = arith.constant 2 : index
    %19 = memref.load %arg2[%18, %c2] : memref<2x9xf32, #tpu.memory_space<smem>>
    %20 = vector.broadcast %19 : f32 to vector<16x16xf32>
    %21 = arith.addf %17, %20 : vector<16x16xf32>
    %22 = arith.mulf %21, %1 : vector<16x16xf32>
    %c0_3 = arith.constant 0 : index
    %c0_4 = arith.constant 0 : index
    %c0_5 = arith.constant 0 : index
    %c0_6 = arith.constant 0 : index
    %23 = vector.load %arg4[%c0_3, %c0_4, %c0_5, %c0_6] : memref<1x4x16x16xf32, #tpu.memory_space<vmem>>, vector<1x1x16x16xf32>
    %24 = vector.shape_cast %23 : vector<1x1x16x16xf32> to vector<16x16xf32>
    %25 = vector.shape_cast %22 : vector<16x16xf32> to vector<1x1x16x16xf32>
    tpu.vector_store %arg4[%c0_3, %c0_4, %c0_5, %c0_6], %25 {strides = array<i32>} : memref<1x4x16x16xf32, #tpu.memory_space<vmem>>, vector<1x1x16x16xf32>,
    %26 = arith.index_cast %arg0 : i32 to index
    %c3 = arith.constant 3 : index
    %27 = memref.load %arg2[%26, %c3] : memref<2x9xf32, #tpu.memory_space<smem>>
    %28 = vector.broadcast %27 : f32 to vector<16x16xf32>
    %29 = arith.mulf %28, %3 : vector<16x16xf32>
    %30 = arith.index_cast %arg0 : i32 to index
    %c4 = arith.constant 4 : index
    %31 = memref.load %arg2[%30, %c4] : memref<2x9xf32, #tpu.memory_space<smem>>
    %32 = vector.broadcast %31 : f32 to vector<16x16xf32>
    %33 = arith.mulf %32, %8 : vector<16x16xf32>
    %34 = arith.addf %29, %33 : vector<16x16xf32>
    %35 = arith.index_cast %arg0 : i32 to index
    %c5 = arith.constant 5 : index
    %36 = memref.load %arg2[%35, %c5] : memref<2x9xf32, #tpu.memory_space<smem>>
    %37 = vector.broadcast %36 : f32 to vector<16x16xf32>
    %38 = arith.addf %34, %37 : vector<16x16xf32>
    %39 = arith.mulf %38, %1 : vector<16x16xf32>
    %c0_7 = arith.constant 0 : index
    %c1_8 = arith.constant 1 : index
    %c0_9 = arith.constant 0 : index
    %c0_10 = arith.constant 0 : index
    %40 = vector.load %arg4[%c0_7, %c1_8, %c0_9, %c0_10] : memref<1x4x16x16xf32, #tpu.memory_space<vmem>>, vector<1x1x16x16xf32>
    %41 = vector.shape_cast %40 : vector<1x1x16x16xf32> to vector<16x16xf32>
    %42 = vector.shape_cast %39 : vector<16x16xf32> to vector<1x1x16x16xf32>
    tpu.vector_store %arg4[%c0_7, %c1_8, %c0_9, %c0_10], %42 {strides = array<i32>} : memref<1x4x16x16xf32, #tpu.memory_space<vmem>>, vector<1x1x16x16xf32>,
    %43 = arith.index_cast %arg0 : i32 to index
    %c6 = arith.constant 6 : index
    %44 = memref.load %arg2[%43, %c6] : memref<2x9xf32, #tpu.memory_space<smem>>
    %45 = vector.broadcast %44 : f32 to vector<16x16xf32>
    %46 = arith.mulf %45, %3 : vector<16x16xf32>
    %47 = arith.index_cast %arg0 : i32 to index
    %c7 = arith.constant 7 : index
    %48 = memref.load %arg2[%47, %c7] : memref<2x9xf32, #tpu.memory_space<smem>>
    %49 = vector.broadcast %48 : f32 to vector<16x16xf32>
    %50 = arith.mulf %49, %8 : vector<16x16xf32>
    %51 = arith.addf %46, %50 : vector<16x16xf32>
    %52 = arith.index_cast %arg0 : i32 to index
    %c8 = arith.constant 8 : index
    %53 = memref.load %arg2[%52, %c8] : memref<2x9xf32, #tpu.memory_space<smem>>
    %54 = vector.broadcast %53 : f32 to vector<16x16xf32>
    %55 = arith.addf %51, %54 : vector<16x16xf32>
    %56 = arith.mulf %55, %1 : vector<16x16xf32>
    %c0_11 = arith.constant 0 : index
    %c2_12 = arith.constant 2 : index
    %c0_13 = arith.constant 0 : index
    %c0_14 = arith.constant 0 : index
    %57 = vector.load %arg4[%c0_11, %c2_12, %c0_13, %c0_14] : memref<1x4x16x16xf32, #tpu.memory_space<vmem>>, vector<1x1x16x16xf32>
    %58 = vector.shape_cast %57 : vector<1x1x16x16xf32> to vector<16x16xf32>
    %59 = vector.shape_cast %56 : vector<16x16xf32> to vector<1x1x16x16xf32>
    tpu.vector_store %arg4[%c0_11, %c2_12, %c0_13, %c0_14], %59 {strides = array<i32>} : memref<1x4x16x16xf32, #tpu.memory_space<vmem>>, vector<1x1x16x16xf32>,
    %cst = arith.constant 1.000000e+00 : f32
    %60 = vector.broadcast %cst : f32 to vector<16x16xf32>
    %c0_15 = arith.constant 0 : index
    %c3_16 = arith.constant 3 : index
    %c0_17 = arith.constant 0 : index
    %c0_18 = arith.constant 0 : index
    %61 = vector.load %arg4[%c0_15, %c3_16, %c0_17, %c0_18] : memref<1x4x16x16xf32, #tpu.memory_space<vmem>>, vector<1x1x16x16xf32>
    %62 = vector.shape_cast %61 : vector<1x1x16x16xf32> to vector<16x16xf32>
    %63 = vector.shape_cast %60 : vector<16x16xf32> to vector<1x1x16x16xf32>
    tpu.vector_store %arg4[%c0_15, %c3_16, %c0_17, %c0_18], %63 {strides = array<i32>} : memref<1x4x16x16xf32, #tpu.memory_space<vmem>>, vector<1x1x16x16xf32>,
    return
  }
  func.func @transform_0(%arg0: i32, %arg1: i32) -> (i32, i32) {
    %c0_i32 = arith.constant 0 : i32
    %c0_i32_0 = arith.constant 0 : i32
    %c0_i32_1 = arith.constant 0 : i32
    return %c0_i32, %c0_i32_0 : i32, i32
  }
  func.func @transform_1(%arg0: i32, %arg1: i32) -> (i32, i32, i32) {
    %c0_i32 = arith.constant 0 : i32
    %c0_i32_0 = arith.constant 0 : i32
    return %arg0, %arg1, %c0_i32 : i32, i32, i32
  }
  func.func @transform_2(%arg0: i32, %arg1: i32) -> (i32, i32, i32, i32) {
    %c0_i32 = arith.constant 0 : i32
    %c0_i32_0 = arith.constant 0 : i32
    %c0_i32_1 = arith.constant 0 : i32
    return %arg0, %c0_i32, %arg1, %c0_i32_0 : i32, i32, i32, i32
  }
}

</mosaic_0001>

<llo_original>
// kernel: tpu_custom_call.1
$region0: #{tpu_custom_call.1}
  #allocation0 [shape = 'u32[]', space=smem, size = 0x4, offset = 0x4, fixed_abs, tag = 'smem constant byte address 0x4 - core index']
  #allocation1 [shape = 'u32[72,128]{1,0:T(1,128)}', space=vmem, size = 0x9000, scoped, tag = 'internal scratch']
  %s0 = inlined_call_operand.hbm [shape: f32[2,9], index: 0, kind: input, shape index: {}]
  %s1 = inlined_call_operand.hbm [shape: f32[2,16,16], index: 1, kind: input, shape index: {}]
  %s2 = inlined_call_operand.hbm [shape: f32[2,4,16,16], index: 2, kind: output, shape index: {}]
  %s3 = sld [smem:[#allocation0]]
  $region49: #{tpu_custom_call.1} parent=0
    _
  %s5 = ssub.s32 1, %s3
  %s6 = scalar_select 0, %s5, %s3
  $region1: #{tpu_custom_call.1} parent=0
    #allocation2 [shape = 'u8[1024]{0}', space=smem, size = 0x400, scoped, tag = 'input window, operand 0, single buffered']
    #allocation3 [shape = 's32[2]{0}', space=sflag, size = 0x8, scoped, tag = 'scoped memory for tpu_custom_call.1']
    #allocation4 [shape = 's32[2]{0}', space=sflag, size = 0x8, scoped, tag = 'scoped memory for tpu_custom_call.1']
    #allocation5 [shape = 's32[2]{0}', space=sflag, size = 0x8, scoped, tag = 'scoped memory for tpu_custom_call.1']
    #allocation6 [shape = 'u8[16384]{0}', space=vmem, size = 0x4000, scoped, tag = 'input window, operand 1']
    #allocation7 [shape = 'u8[65536]{0}', space=vmem, size = 0x10000, scoped, tag = 'output window, operand 0']
    %7 = vsyncpa [#allocation5], 0
    %8 = vsyncpa [#allocation3], 0
    %s9 = scalar_lea.sflag [#allocation3], 1
    %10 = vsyncpa %s9, 0
    %11 = vsyncpa [#allocation4], 0
    %s12 = scalar_lea.sflag [#allocation4], 1
    %13 = vsyncpa %s12, 0
    loop: start=0, step=1, limit=4
    $region2: #{tpu_custom_call.1} parent=1 // loop_pre_header
      _
    $region3: #{tpu_custom_call.1} parent=1 // loop_header
      %s15 = sphi 0, %s19
      %p16 = scmp.ge.s32.totalorder %s15, 4
      %s22 = sphi 0, %s34
      %s23 = sphi 0, %s30
      %s24 = sphi 0, %s22
      %s25 = sphi 0, %s23
      %s26 = sphi 0, %s24
      %s27 = sphi 0, %s25
      %s35 = sphi 0, %s35
      %s37 = sphi 0, %s35
      %s38 = sphi 0, %s37
      %s52 = sphi 0, %s38
      %s60 = sphi 0, %s62
      %s63 = sphi 0, %s60
      %s64 = sphi 0, %s63
      %s80 = sphi 0, %s64
      %s88 = sphi 0, %s90
      %s91 = sphi 0, %s88
      %s92 = sphi 0, %s91
      %s108 = sphi 0, %s92
    $region4: #{tpu_custom_call.1} parent=1 // loop_header_branch
      %18 = sbr.rel (%p16) target = $region8
    $region5: #{tpu_custom_call.1} parent=1 // loop_body
      %s20 = ssub.s32 %s15, 1
      %s21 = ssub.s32 %s15, 2
      %s28 = sadd.s32 1, %s23
      %p29 = scmp.ge.s32.totalorder %s28, 1
      %s30 = scalar_select %p29, 0, %s28
      %s31 = sadd.s32 1, %s22
      %s32 = scalar_select %p29, %s31, %s22
      %p33 = scmp.ge.s32.totalorder %s32, 2
      %s34 = scalar_select %p33, 0, %s32
      %s36 = sadd.s32 %s35, 1
      %p39 = scmp.eq.s32.totalorder %s15, 1
      %p40 = scmp.ne.s32.totalorder %s35, %s37
      %p41 = scmp.eq.s32.totalorder %s15, 0
      %p42 = por %p40, %p41
      %p43 = scmp.ne.s32.totalorder %s35, %s37
      %p44 = scmp.eq.s32.totalorder %s20, 1
      %p45 = por %p43, %p44
      %p46 = scmp.ne.s32.totalorder %s37, %s38
      %p47 = scmp.eq.s32.totalorder %s20, 0
      %p48 = por %p46, %p47
      %p49 = scmp.ne.s32.totalorder %s37, %s38
      %p50 = scmp.eq.s32.totalorder %s21, 1
      %p51 = por %p49, %p50
      %p53 = scmp.ne.s32.totalorder %s38, %s52
      %p54 = scmp.eq.s32.totalorder %s21, 0
      %p55 = por %p53, %p54
      %s56 = ssub.s32 %s22, %s34
      %s57 = ssub.s32 %s23, %s30
      %s58 = sor.u32 %s56, %s57
      %p59 = scmp.eq.s32.totalorder %s58, 0
      %s61 = sadd.s32 %s60, 1
      %s62 = scalar_select %p59, %s60, %s61
      %p65 = pneg %p59
      %p66 = scmp.eq.s32.totalorder %s15, 1
      %p67 = por %p65, %p66
      %p68 = scmp.ne.s32.totalorder %s60, %s63
      %p69 = scmp.eq.s32.totalorder %s15, 0
      %p70 = por %p68, %p69
      %p71 = scmp.ne.s32.totalorder %s60, %s63
      %p72 = scmp.eq.s32.totalorder %s20, 1
      %p73 = por %p71, %p72
      %p74 = scmp.ne.s32.totalorder %s63, %s64
      %p75 = scmp.eq.s32.totalorder %s20, 0
      %p76 = por %p74, %p75
      %p77 = scmp.ne.s32.totalorder %s63, %s64
      %p78 = scmp.eq.s32.totalorder %s21, 1
      %p79 = por %p77, %p78
      %p81 = scmp.ne.s32.totalorder %s64, %s80
      %p82 = scmp.eq.s32.totalorder %s21, 0
      %p83 = por %p81, %p82
      %s84 = ssub.s32 %s22, %s34
      %s85 = ssub.s32 %s23, %s30
      %s86 = sor.u32 %s84, %s85
      %p87 = scmp.eq.s32.totalorder %s86, 0
      %s89 = sadd.s32 %s88, 1
      %s90 = scalar_select %p87, %s88, %s89
      %p93 = pneg %p87
      %p94 = scmp.eq.s32.totalorder %s15, 1
      %p95 = por %p93, %p94
      %p96 = scmp.ne.s32.totalorder %s88, %s91
      %p97 = scmp.eq.s32.totalorder %s15, 0
      %p98 = por %p96, %p97
      %p99 = scmp.ne.s32.totalorder %s88, %s91
      %p100 = scmp.eq.s32.totalorder %s20, 1
      %p101 = por %p99, %p100
      %p102 = scmp.ne.s32.totalorder %s91, %s92
      %p103 = scmp.eq.s32.totalorder %s20, 0
      %p104 = por %p102, %p103
      %p105 = scmp.ne.s32.totalorder %s91, %s92
      %p106 = scmp.eq.s32.totalorder %s21, 1
      %p107 = por %p105, %p106
      %p109 = scmp.ne.s32.totalorder %s92, %s108
      %p110 = scmp.eq.s32.totalorder %s21, 0
      %p111 = por %p109, %p110
      %p112 = scmp.le.s32.totalorder 1, %s15
      %p113 = scmp.lt.s32.totalorder %s15, 3
      %p114 = pnand %p112, %p113
      %p115 = pneg %p114
      // Predicated region
      $region9: #{tpu_custom_call.1} parent=5 // pred_check
        _
      $region10: #{tpu_custom_call.1} parent=5 // pred_check_branch
        %117 = sbr.rel (%p114) target = $region12
      $region11: #{tpu_custom_call.1} parent=5 // pred_region
        %s118 = ssub.s32 %s15, 1
        // Predicated region
        $region13: #{tpu_custom_call.1} parent=11 // pred_check
          %p119 = pneg %p48
        $region14: #{tpu_custom_call.1} parent=11 // pred_check_branch
          %121 = sbr.rel (%p119) target = $region16
        $region15: #{tpu_custom_call.1} parent=11 // pred_region
          %123 = vsyncadd [#allocation5], 0
          %s125 = sshll.u32 %s0, 4
          %s126 = int_to_ptr.hbm [resolvable:$true] %s125
          %128 = dma.hbm_to_smem %s126, 32, [#allocation2], [#allocation5]
        $region16: #{tpu_custom_call.1} parent=11 // pred_fallthru
          _
      $region12: #{tpu_custom_call.1} parent=5 // pred_fallthru
        _
      %p129 = scmp.lt.s32.totalorder %s15, 2
      // Predicated region
      $region17: #{tpu_custom_call.1} parent=5 // pred_check
        %p130 = pneg %p129
      $region18: #{tpu_custom_call.1} parent=5 // pred_check_branch
        %132 = sbr.rel (%p130) target = $region20
      $region19: #{tpu_custom_call.1} parent=5 // pred_region
        // Predicated region
        $region21: #{tpu_custom_call.1} parent=19 // pred_check
          %p133 = pneg %p70
        $region22: #{tpu_custom_call.1} parent=19 // pred_check_branch
          %135 = sbr.rel (%p133) target = $region24
        $region23: #{tpu_custom_call.1} parent=19 // pred_region
          %s136 = sand.u32 %s60, 1
          %s137 = scalar_lea.sflag [#allocation3], %s136
          %s138 = sand.u32 %s60, 1
          %s139 = smul.addr %s138, 16
          %s140 = scalar_lea.vmem [#allocation6], %s139
          %s141 = smul.u32 2, %s23
          %143 = vsyncadd %s137, 0
          %s144 = smul.addr %s22, 2
          %s145 = sadd.s32 %s141, %s144
          %s146 = smul.addr %s145, 8
          %s147 = scalar_lea.hbm %s1, %s146
          %s148 = sshll.u32 %s147, 4
          %s149 = int_to_ptr.hbm [resolvable:$true] %s148
          %s150 = sshll.u32 %s140, 4
          %s151 = int_to_ptr.vmem [resolvable:$true] %s150
          %156 = dma.hbm_to_vmem [thread:$0]  %s149, 256, %s151, %s137, 128, 128, 8
        $region24: #{tpu_custom_call.1} parent=19 // pred_fallthru
          _
      $region20: #{tpu_custom_call.1} parent=5 // pred_fallthru
        _
      %p157 = scmp.le.s32.totalorder 1, %s15
      %p158 = scmp.lt.s32.totalorder %s15, 3
      %p159 = pnand %p157, %p158
      %p160 = pneg %p159
      // Predicated region
      $region25: #{tpu_custom_call.1} parent=5 // pred_check
        _
      $region26: #{tpu_custom_call.1} parent=5 // pred_check_branch
        %162 = sbr.rel (%p159) target = $region28
      $region27: #{tpu_custom_call.1} parent=5 // pred_region
        %s163 = ssub.s32 %s15, 1
        // Predicated region
        $region29: #{tpu_custom_call.1} parent=27 // pred_check
          %p164 = pneg %p48
        $region30: #{tpu_custom_call.1} parent=27 // pred_check_branch
          %166 = sbr.rel (%p164) target = $region32
        $region31: #{tpu_custom_call.1} parent=27 // pred_region
          %168 = dma.done [#allocation5], 32
        $region32: #{tpu_custom_call.1} parent=27 // pred_fallthru
          _
        %s169 = sand.u32 %s63, 1
        %s170 = scalar_lea.sflag [#allocation3], %s169
        %s171 = sand.u32 %s63, 1
        %s172 = smul.addr %s171, 16
        %s173 = scalar_lea.vmem [#allocation6], %s172
        // Predicated region
        $region33: #{tpu_custom_call.1} parent=27 // pred_check
          %p174 = pneg %p76
        $region34: #{tpu_custom_call.1} parent=27 // pred_check_branch
          %176 = sbr.rel (%p174) target = $region36
        $region35: #{tpu_custom_call.1} parent=27 // pred_region
          %178 = dma.done %s170, 256
        $region36: #{tpu_custom_call.1} parent=27 // pred_fallthru
          _
        %179 = sfence
        %p180 = pneg %p48
        %p181 = pneg %p45
        %s182 = sand.u32 %s63, 1
        %s183 = scalar_lea.sflag [#allocation3], %s182
        %s184 = sand.u32 %s63, 1
        %s185 = smul.addr %s184, 16
        %s186 = scalar_lea.vmem [#allocation6], %s185
        %p187 = pneg %p76
        %p188 = pneg %p73
        %p189 = pneg %p104
        %p190 = pneg %p101
        %s191 = sand.u32 %s91, 1
        %s192 = scalar_lea.sflag [#allocation4], %s191
        %s193 = sand.u32 %s91, 1
        %s194 = smul.addr %s193, 64
        %s195 = scalar_lea.vmem [#allocation7], %s194
        %s196 = smul.u32 2, %s25
        %s197 = smul.u32 2, %s25
        %v198 = vld [vmem:[%s173] sm:$0xff]
        %v199 = vld [vmem:[%s173 + $0x8] sm:$0xff]
        %v200 = vlaneseq
        %v201 = vand.u32 %v200, 127
        %v202 = vcvt.s32.f32 %v201
        %v203 = vlaneseq
        %v204 = vshrl.u32 %v203, 7
        %v205 = vadd.s32 %v204, 8
        %s206 = smul.u32 %s25, 16
        %v207 = vstv %s206
        %v208 = vadd.s32 %v204, %v207
        %v209 = vadd.s32 %v205, %v207
        %v210 = vcvt.s32.f32 %v208
        %v211 = vcvt.s32.f32 %v209
        %s212 = smul.u32 %s24, 128
        %s213 = sld [smem:[#allocation2 + %s212]]
        %v214 = vstv %s213
        %v215 = vmul.f32 %v214, %v202
        %s216 = sadd.s32 %s212, 1
        %s217 = sld [smem:[#allocation2 + %s216]]
        %v218 = vstv %s217
        %v219 = vmul.f32 %v218, %v210
        %v220 = vmul.f32 %v218, %v211
        %v221 = vadd.f32 %v215, %v219
        %v222 = vadd.f32 %v215, %v220
        %s223 = sadd.s32 %s212, 2
        %s224 = sld [smem:[#allocation2 + %s223]]
        %v225 = vstv %s224
        %v226 = vadd.f32 %v221, %v225
        %v227 = vadd.f32 %v222, %v225
        %v228 = vmul.f32 %v226, %v198
        %v229 = vmul.f32 %v227, %v199
        %vm230 = vcmask 130048
        %231 = vst.msk [vmem:[%s195] sm:$0xff] %vm230, %v228
        %232 = vst.msk [vmem:[%s195 + $0x8] sm:$0xff] %vm230, %v229
        %s233 = sadd.s32 %s212, 3
        %s234 = sld [smem:[#allocation2 + %s233]]
        %v235 = vstv %s234
        %v236 = vmul.f32 %v235, %v202
        %s237 = sadd.s32 %s212, 4
        %s238 = sld [smem:[#allocation2 + %s237]]
        %v239 = vstv %s238
        %v240 = vmul.f32 %v239, %v210
        %v241 = vmul.f32 %v239, %v211
        %v242 = vadd.f32 %v236, %v240
        %v243 = vadd.f32 %v236, %v241
        %s244 = sadd.s32 %s212, 5
        %s245 = sld [smem:[#allocation2 + %s244]]
        %v246 = vstv %s245
        %v247 = vadd.f32 %v242, %v246
        %v248 = vadd.f32 %v243, %v246
        %v249 = vmul.f32 %v247, %v198
        %v250 = vmul.f32 %v248, %v199
        %s251 = scalar_lea.vmem %s195, 16 [#allocation7]
        %252 = vst.msk [vmem:[%s251] sm:$0xff] %vm230, %v249
        %253 = vst.msk [vmem:[%s251 + $0x8] sm:$0xff] %vm230, %v250
        %s254 = sadd.s32 %s212, 6
        %s255 = sld [smem:[#allocation2 + %s254]]
        %v256 = vstv %s255
        %v257 = vmul.f32 %v256, %v202
        %s258 = sadd.s32 %s212, 7
        %s259 = sld [smem:[#allocation2 + %s258]]
        %v260 = vstv %s259
        %v261 = vmul.f32 %v260, %v210
        %v262 = vmul.f32 %v260, %v211
        %v263 = vadd.f32 %v257, %v261
        %v264 = vadd.f32 %v257, %v262
        %s265 = sadd.s32 %s212, 8
        %s266 = sld [smem:[#allocation2 + %s265]]
        %v267 = vstv %s266
        %v268 = vadd.f32 %v263, %v267
        %v269 = vadd.f32 %v264, %v267
        %v270 = vmul.f32 %v268, %v198
        %v271 = vmul.f32 %v269, %v199
        %s272 = scalar_lea.vmem %s195, 32 [#allocation7]
        %273 = vst.msk [vmem:[%s272] sm:$0xff] %vm230, %v270
        %274 = vst.msk [vmem:[%s272 + $0x8] sm:$0xff] %vm230, %v271
        %s275 = scalar_lea.vmem %s195, 48 [#allocation7]
        %276 = vst.msk [vmem:[%s275] sm:$0xff] %vm230, 1.0
        %277 = vst.msk [vmem:[%s275 + $0x8] sm:$0xff] %vm230, 1.0
        %s278 = sand.u32 %s91, 1
        %s279 = scalar_lea.sflag [#allocation4], %s278
        %s280 = sand.u32 %s91, 1
        %s281 = smul.addr %s280, 64
        %s282 = scalar_lea.vmem [#allocation7], %s281
        // Predicated region
        $region37: #{tpu_custom_call.1} parent=27 // pred_check
          %p283 = pneg %p101
        $region38: #{tpu_custom_call.1} parent=27 // pred_check_branch
          %285 = sbr.rel (%p283) target = $region40
        $region39: #{tpu_custom_call.1} parent=27 // pred_region
          %s286 = smul.u32 2, %s25
          %288 = vsyncadd %s279, 0
          %s289 = smul.addr %s24, 8
          %s290 = sadd.s32 %s286, %s289
          %s291 = smul.addr %s290, 8
          %s292 = scalar_lea.hbm %s2, %s291
          %s293 = sshll.u32 %s282, 4
          %s294 = int_to_ptr.vmem [resolvable:$true] %s293
          %s295 = sshll.u32 %s292, 4
          %s296 = int_to_ptr.hbm [resolvable:$true] %s295
          %301 = dma.vmem_to_hbm [thread:$0]  %s294, 1024, %s296, %s279, 128, 128, 8
        $region40: #{tpu_custom_call.1} parent=27 // pred_fallthru
          _
      $region28: #{tpu_custom_call.1} parent=5 // pred_fallthru
        _
      %p302 = scmp.le.s32.totalorder 2, %s15
      // Predicated region
      $region41: #{tpu_custom_call.1} parent=5 // pred_check
        %p303 = pneg %p302
      $region42: #{tpu_custom_call.1} parent=5 // pred_check_branch
        %305 = sbr.rel (%p303) target = $region44
      $region43: #{tpu_custom_call.1} parent=5 // pred_region
        %s306 = ssub.s32 %s15, 2
        // Predicated region
        $region45: #{tpu_custom_call.1} parent=43 // pred_check
          %p307 = pneg %p107
        $region46: #{tpu_custom_call.1} parent=43 // pred_check_branch
          %309 = sbr.rel (%p307) target = $region48
        $region47: #{tpu_custom_call.1} parent=43 // pred_region
          %s310 = sand.u32 %s92, 1
          %s311 = scalar_lea.sflag [#allocation4], %s310
          %s312 = sand.u32 %s92, 1
          %s313 = smul.addr %s312, 64
          %s314 = scalar_lea.vmem [#allocation7], %s313
          %316 = dma.done %s311, 1024
        $region48: #{tpu_custom_call.1} parent=43 // pred_fallthru
          _
      $region44: #{tpu_custom_call.1} parent=5 // pred_fallthru
        _
    $region6: #{tpu_custom_call.1} parent=1 // loop_footer
      %s19 = sadd.s32 1, %s15
    $region7: #{tpu_custom_call.1} parent=1 // loop_footer_branch
      %14 = sbr.rel target = $region3
    $region8: #{tpu_custom_call.1} parent=1 // loop_exit
      _
    %317 = vsyncpa [#allocation3], 1
    %s318 = scalar_lea.sflag [#allocation3], 1
    %319 = vsyncpa %s318, 1
    %320 = vsyncpa [#allocation4], 1
    %s321 = scalar_lea.sflag [#allocation4], 1
    %322 = vsyncpa %s321, 1
    %323 = vsyncpa [#allocation5], 1
    %s324 = scalar_lea.sflag [#allocation5], 1
    %325 = vsyncpa %s324, 1

</llo_original>
